<compile_context>
chip_gen: v7x
topology: tpu7x:2x2x1
jax: 0.10.0
libtpu: 0.0.40
codegen_flags: <defaults>
</compile_context>

<pallas_src>
import jax
import jax.numpy as jnp
from jax.experimental import pallas as pl
from jax.experimental.pallas import tpu as pltpu  # noqa: F401  (kept for parity / future tiling)


def _linear_hardswish_kernel(x_ref, w_ref, o_ref):
    # x_ref: (M, K) f32, w_ref: (K, N) f32, o_ref: (M, N) f32.
    x = x_ref[...]
    w = w_ref[...]
    k_dim = x.shape[1]

    # K is tiny (3): do the "matmul" as K broadcast FMAs on the VPU instead of
    # pushing a 4x3x12 dot through the MXU (MRF/MRB drain latency >> compute).
    acc = x[:, 0:1] * w[0:1, :]
    for k in range(1, k_dim):            # static unroll, K is a compile-time 3
        acc = acc + x[:, k : k + 1] * w[k : k + 1, :]

    # hardswish: v1 * clamp(v1 + 3, 0, 6) * (1/6)   (multiply, not divide)
    v2 = acc * jnp.clip(acc + 3.0, 0.0, 6.0)
    o_ref[...] = (v2 * (1.0 / 6.0)).astype(o_ref.dtype)


def linear_hardswish(x, w_t):
    """x: (..., in_features), w_t: (in_features, out_features) pre-transposed."""
    lead_shape = x.shape[:-1]
    in_f = x.shape[-1]
    out_f = w_t.shape[-1]

    x2d = x.reshape(-1, in_f)
    m = x2d.shape[0]

    # Single un-padded block: block_shape equals the full array dims, which is
    # legal regardless of (8,128) alignment.  A masked partial store of one
    # (4,12) tile is a few cycles — far below the per-call floor — so padding
    # to a lane-dense tile would only add XLA fusions around the call.
    out = pl.pallas_call(
        _linear_hardswish_kernel,
        out_shape=jax.ShapeDtypeStruct((m, out_f), x.dtype),
        in_specs=[
            pl.BlockSpec((m, in_f), lambda: (0, 0)),
            pl.BlockSpec((in_f, out_f), lambda: (0, 0)),
        ],
        out_specs=pl.BlockSpec((m, out_f), lambda: (0, 0)),
        cost_estimate=pl.CostEstimate(
            flops=2 * m * in_f * out_f,
            bytes_accessed=(m * in_f + in_f * out_f + m * out_f) * 4,
            transcendentals=0,
        ),
    )(x2d, w_t)

    return out.reshape(*lead_shape, out_f)


if __name__ == "__main__":
    key = jax.random.PRNGKey(0)
    kx, kw = jax.random.split(key)

    in_features, out_features = 3, 12
    # Input consistent with Linear(3, 12): (batch=1, seq=4, in_features=3)
    x = jax.random.normal(kx, (1, 4, in_features), dtype=jnp.float32)

    # Deterministic weight init mimicking torch.nn.Linear: U(-1/sqrt(in), 1/sqrt(in)).
    bound = 1.0 / jnp.sqrt(jnp.float32(in_features))
    w = jax.random.uniform(
        kw, (out_features, in_features), dtype=jnp.float32,
        minval=-bound, maxval=bound,
    )
    w_t = w.T  # (in_features, out_features), pre-transposed for the kernel

    out = linear_hardswish(x, w_t)
    out = jax.block_until_ready(out)

    # Reference check in plain JAX.
    v1 = x @ w_t
    ref = v1 * jnp.clip(v1 + 3.0, 0.0, 6.0) / 6.0
    assert out.shape == (1, 4, out_features)
    assert jnp.allclose(out, ref, atol=1e-5, rtol=1e-5)

    print("KERNEL_OK")
</pallas_src>

<mosaic_0001>
module attributes {stable_mosaic.version = 11 : i64} {
  func.func @_linear_hardswish_kernel(%arg0: memref<4x3xf32, #tpu.memory_space<vmem>>, %arg1: memref<3x12xf32, #tpu.memory_space<vmem>>, %arg2: memref<4x12xf32, #tpu.memory_space<vmem>>) attributes {dimension_semantics = [], scalar_prefetch = 0 : i64, scratch_operands = 0 : i64, tpu.core_type = #tpu.core_type<tc>} {
    %c0 = arith.constant 0 : index
    %c0_0 = arith.constant 0 : index
    %0 = vector.load %arg0[%c0, %c0_0] : memref<4x3xf32, #tpu.memory_space<vmem>>, vector<4x3xf32>
    %c0_1 = arith.constant 0 : index
    %c0_2 = arith.constant 0 : index
    %1 = vector.load %arg1[%c0_1, %c0_2] : memref<3x12xf32, #tpu.memory_space<vmem>>, vector<3x12xf32>
    %2 = vector.extract_strided_slice %0 {offsets = [0, 0], sizes = [4, 1], strides = [1, 1]} : vector<4x3xf32> to vector<4x1xf32>
    %3 = vector.extract_strided_slice %1 {offsets = [0, 0], sizes = [1, 12], strides = [1, 1]} : vector<3x12xf32> to vector<1x12xf32>
    %4 = vector.broadcast %2 : vector<4x1xf32> to vector<4x12xf32>
    %5 = vector.broadcast %3 : vector<1x12xf32> to vector<4x12xf32>
    %6 = arith.mulf %4, %5 : vector<4x12xf32>
    %7 = vector.extract_strided_slice %0 {offsets = [0, 1], sizes = [4, 1], strides = [1, 1]} : vector<4x3xf32> to vector<4x1xf32>
    %8 = vector.extract_strided_slice %1 {offsets = [1, 0], sizes = [1, 12], strides = [1, 1]} : vector<3x12xf32> to vector<1x12xf32>
    %9 = vector.broadcast %7 : vector<4x1xf32> to vector<4x12xf32>
    %10 = vector.broadcast %8 : vector<1x12xf32> to vector<4x12xf32>
    %11 = arith.mulf %9, %10 : vector<4x12xf32>
    %12 = arith.addf %6, %11 : vector<4x12xf32>
    %13 = vector.extract_strided_slice %0 {offsets = [0, 2], sizes = [4, 1], strides = [1, 1]} : vector<4x3xf32> to vector<4x1xf32>
    %14 = vector.extract_strided_slice %1 {offsets = [2, 0], sizes = [1, 12], strides = [1, 1]} : vector<3x12xf32> to vector<1x12xf32>
    %15 = vector.broadcast %13 : vector<4x1xf32> to vector<4x12xf32>
    %16 = vector.broadcast %14 : vector<1x12xf32> to vector<4x12xf32>
    %17 = arith.mulf %15, %16 : vector<4x12xf32>
    %18 = arith.addf %12, %17 : vector<4x12xf32>
    %cst = arith.constant 3.000000e+00 : f32
    %19 = vector.broadcast %cst : f32 to vector<4x12xf32>
    %20 = arith.addf %18, %19 : vector<4x12xf32>
    %cst_3 = arith.constant 0.000000e+00 : f32
    %cst_4 = arith.constant 6.000000e+00 : f32
    %21 = vector.broadcast %cst_3 : f32 to vector<4x12xf32>
    %22 = arith.maximumf %21, %20 : vector<4x12xf32>
    %23 = vector.broadcast %cst_4 : f32 to vector<4x12xf32>
    %24 = arith.minimumf %23, %22 : vector<4x12xf32>
    %25 = arith.mulf %18, %24 : vector<4x12xf32>
    %cst_5 = arith.constant 0.166666672 : f32
    %26 = vector.broadcast %cst_5 : f32 to vector<4x12xf32>
    %27 = arith.mulf %25, %26 : vector<4x12xf32>
    %c0_6 = arith.constant 0 : index
    %c0_7 = arith.constant 0 : index
    %28 = vector.load %arg2[%c0_6, %c0_7] : memref<4x12xf32, #tpu.memory_space<vmem>>, vector<4x12xf32>
    tpu.vector_store %arg2[%c0_6, %c0_7], %27 {strides = array<i32>} : memref<4x12xf32, #tpu.memory_space<vmem>>, vector<4x12xf32>,
    return
  }
}

</mosaic_0001>

<llo_original>
// kernel: tpu_custom_call.1
$region0: #{tpu_custom_call.1}
  #allocation0 [shape = 'u32[]', space=smem, size = 0x4, offset = 0x4, fixed_abs, tag = 'smem constant byte address 0x4 - core index']
  #allocation1 [shape = 'u32[144,128]{1,0:T(1,128)}', space=vmem, size = 0x12000, scoped, tag = 'internal scratch']
  %s0 = inlined_call_operand.hbm [shape: f32[4,3], index: 0, kind: input, shape index: {}]
  %s1 = inlined_call_operand.hbm [shape: f32[3,12], index: 1, kind: input, shape index: {}]
  %s2 = inlined_call_operand.hbm [shape: f32[4,12], index: 2, kind: output, shape index: {}]
  %s3 = sld [smem:[#allocation0]]
  $region26: #{tpu_custom_call.1} parent=0
    _
  %s5 = ssub.s32 1, %s3
  %s6 = scalar_select 0, %s5, %s3
  $region1: #{tpu_custom_call.1} parent=0
    #allocation2 [shape = 'u8[2048]{0}', space=vmem, size = 0x800, scoped, tag = 'input window, operand 0, single buffered']
    #allocation3 [shape = 's32[1]{0}', space=sflag, size = 0x4, scoped, tag = 'scoped memory for tpu_custom_call.1']
    #allocation4 [shape = 's32[1]{0}', space=sflag, size = 0x4, scoped, tag = 'scoped memory for tpu_custom_call.1']
    #allocation5 [shape = 'u8[2048]{0}', space=vmem, size = 0x800, scoped, tag = 'input window, operand 1, single buffered']
    #allocation6 [shape = 's32[1]{0}', space=sflag, size = 0x4, scoped, tag = 'scoped memory for tpu_custom_call.1']
    #allocation7 [shape = 'u8[2048]{0}', space=vmem, size = 0x800, scoped, tag = 'output window, operand 0, single buffered']
    %7 = vsyncpa [#allocation3], 0
    %8 = vsyncpa [#allocation6], 0
    %9 = vsyncpa [#allocation4], 0
    // Predicated region
    $region2: #{tpu_custom_call.1} parent=1 // pred_check
      _
    $region3: #{tpu_custom_call.1} parent=1 // pred_check_branch
      %11 = sbr.rel (0) target = $region5
    $region4: #{tpu_custom_call.1} parent=1 // pred_region
      %s13 = ssub.s32 64, 64
      %14 = vsyncadd [#allocation3], %s13
      %s16 = sshll.u32 [#allocation2], 4
      %s17 = int_to_ptr.vmem [resolvable:$true] %s16
      %19 = dma.hbm_to_vmem [thread:$0]  %s0, 64, %s17, [#allocation3]
    $region5: #{tpu_custom_call.1} parent=1 // pred_fallthru
      _
    // Predicated region
    $region6: #{tpu_custom_call.1} parent=1 // pred_check
      _
    $region7: #{tpu_custom_call.1} parent=1 // pred_check_branch
      %21 = sbr.rel (0) target = $region9
    $region8: #{tpu_custom_call.1} parent=1 // pred_region
      %s23 = ssub.s32 64, 64
      %24 = vsyncadd [#allocation6], %s23
      %s26 = sshll.u32 [#allocation5], 4
      %s27 = int_to_ptr.vmem [resolvable:$true] %s26
      %29 = dma.hbm_to_vmem [thread:$0]  %s1, 64, %s27, [#allocation6]
    $region9: #{tpu_custom_call.1} parent=1 // pred_fallthru
      _
    // Predicated region
    $region10: #{tpu_custom_call.1} parent=1 // pred_check
      _
    $region11: #{tpu_custom_call.1} parent=1 // pred_check_branch
      %31 = sbr.rel (0) target = $region13
    $region12: #{tpu_custom_call.1} parent=1 // pred_region
      %32 = dma.done [#allocation3], 64
    $region13: #{tpu_custom_call.1} parent=1 // pred_fallthru
      _
    // Predicated region
    $region14: #{tpu_custom_call.1} parent=1 // pred_check
      _
    $region15: #{tpu_custom_call.1} parent=1 // pred_check_branch
      %34 = sbr.rel (0) target = $region17
    $region16: #{tpu_custom_call.1} parent=1 // pred_region
      %35 = dma.done [#allocation6], 64
    $region17: #{tpu_custom_call.1} parent=1 // pred_fallthru
      _
    %v36 = vld [vmem:[#allocation2] sm:$0xf]
    %v37 = vld [vmem:[#allocation5] sm:$0x7]
    %39 = vset.pattern.permute.xlu0 0
    %40 = vperm.xlu0 %39, %v36
    %v41 = vpop.permute.xlu0 %40
    %v43 = vlaneseq
    %v44 = vshrl.u32 %v43, 7
    %v45 = vsub.s32 0, %v44
    %v46 = vrot.slane %v37, %v45
    %v47 = vmul.f32 %v41, %v46
    %48 = vset.pattern.permute.xlu0 1
    %49 = vperm.xlu0 %48, %v36
    %v50 = vpop.permute.xlu0 %49
    %v52 = vlaneseq
    %v53 = vshrl.u32 %v52, 7
    %v54 = vsub.s32 1, %v53
    %v55 = vrot.slane %v37, %v54
    %v56 = vmul.f32 %v50, %v55
    %v57 = vadd.f32 %v47, %v56
    %58 = vset.pattern.permute.xlu0 2
    %59 = vperm.xlu0 %58, %v36
    %v60 = vpop.permute.xlu0 %59
    %v62 = vlaneseq
    %v63 = vshrl.u32 %v62, 7
    %v64 = vsub.s32 2, %v63
    %v65 = vrot.slane %v37, %v64
    %v66 = vmul.f32 %v60, %v65
    %v67 = vadd.f32 %v57, %v66
    %v68 = vadd.f32 %v67, 3.0
    %v69 = vmax.f32 %v68, 0.0
    %v70 = vmin.f32 %v69, 6.0
    %v71 = vmul.f32 %v67, %v70
    %v72 = vmul.f32 %v71, 0.16666667
    %vm73 = vcmask 93184
    %74 = vst.msk [vmem:[#allocation7] sm:$0xf] %vm73, %v72
    // Predicated region
    $region18: #{tpu_custom_call.1} parent=1 // pred_check
      _
    $region19: #{tpu_custom_call.1} parent=1 // pred_check_branch
      %76 = sbr.rel (0) target = $region21
    $region20: #{tpu_custom_call.1} parent=1 // pred_region
      %s78 = ssub.s32 64, 64
      %79 = vsyncadd [#allocation4], %s78
      %s81 = sshll.u32 [#allocation7], 4
      %s82 = int_to_ptr.vmem [resolvable:$true] %s81
      %84 = dma.vmem_to_hbm [thread:$0]  %s82, 64, %s2, [#allocation4]
    $region21: #{tpu_custom_call.1} parent=1 // pred_fallthru
      _
    // Predicated region
    $region22: #{tpu_custom_call.1} parent=1 // pred_check
      _
    $region23: #{tpu_custom_call.1} parent=1 // pred_check_branch
      %86 = sbr.rel (0) target = $region25
    $region24: #{tpu_custom_call.1} parent=1 // pred_region
      %87 = dma.done [#allocation4], 64
    $region25: #{tpu_custom_call.1} parent=1 // pred_fallthru
      _
    %88 = vsyncpa [#allocation3], 1
    %89 = vsyncpa [#allocation6], 1
    %90 = vsyncpa [#allocation4], 1

</llo_original>
